<compile_context>
chip_gen: v6e
topology: v6e:2x2x1
jax: 0.10.0
libtpu: 0.0.40
codegen_flags: <defaults>
</compile_context>

<pallas_src>
import jax
import jax.numpy as jnp
from jax.experimental import pallas as pl
from jax.experimental.pallas import tpu as pltpu


def _round_up(x, m):
    return (x + m - 1) // m * m


def _make_value_critic_kernel(n_layers, compute_dtype):
    """Fused MLP forward in column layout: x is (features, TILE_B)."""

    def kernel(*refs):
        obs_ref, out_ref = refs[0], refs[-1]
        prefs = refs[1:-1]                     # w1,b1, ..., wn,bn, wo, bo(SMEM)
        x = obs_ref[...]                       # (ob_dim, TILE_B), compute_dtype
        for l in range(n_layers):
            w = prefs[2 * l][...]              # (H_out, H_in), compute_dtype
            b = prefs[2 * l + 1][...]          # (H_out, 1) f32 -> lane broadcast
            acc = jnp.dot(w, x, preferred_element_type=jnp.float32) + b
            # tanh in compute_dtype (bf16 on v6e/v7x doubles EUP throughput)
            x = jnp.tanh(acc.astype(compute_dtype))
        wo = prefs[-2][...]                    # (H, 1) f32
        bo = prefs[-1][0, 0]                   # scalar output bias from SMEM
        # head: VPU multiply + sublane (feature-axis) reduce instead of a
        # 1-wide MXU matmul.  Batch lanes stay independent, so unspecified
        # data in partial-boundary lanes never mixes into valid lanes.
        v = jnp.sum(x.astype(jnp.float32) * wo, axis=0, keepdims=True) + bo
        out_ref[...] = v.astype(out_ref.dtype)

    return kernel


def value_critic_forward_cols(obs_cols, params, *, tile_b=32768, min_grid_steps=2,
                              compute_dtype=jnp.float32):
    """Column-layout forward.

    obs_cols: (ob_dim, B) observations (batch on the lane axis); ideally produced
              directly in this layout (and in compute_dtype) by the caller.
    params:   list of (W (out,in), b (out,1)) per Linear layer; last entry is the head.
    Returns   (1, B) float32 values — a lane-dense slab, no trailing transpose.
    """
    ob_dim, B = obs_cols.shape
    n_layers = len(params) - 1
    H = params[0][0].shape[0]

    # Batch lives on the lane axis -> tile must be a multiple of 128.  Big tiles
    # amortize the per-grid-step overhead; clamp so the ("parallel",) grid keeps
    # >= min_grid_steps steps when B is large enough (v7x two-TC sharding).
    tile_b = max(128, _round_up(min(int(tile_b), max(int(B), 1)), 128))
    if min_grid_steps > 1 and B > 128:
        tile_b = min(tile_b, max(128, _round_up(pl.cdiv(int(B), min_grid_steps), 128)))
    grid = (pl.cdiv(int(B), tile_b),)

    obs_cols = obs_cols.astype(compute_dtype)

    vmem_params = []
    for (w, b) in params[:-1]:
        vmem_params += [w.astype(compute_dtype), b.astype(jnp.float32)]
    wo, bo = params[-1]
    vmem_params.append(wo.astype(jnp.float32).T)           # (H, 1) column for VPU head
    bo_smem = bo.astype(jnp.float32).reshape(1, 1)          # (1, 1) scalar via SMEM

    obs_spec = pl.BlockSpec((ob_dim, tile_b), lambda i: (0, i))
    smem_spec = pl.BlockSpec(memory_space=pltpu.MemorySpace.SMEM)
    out_spec = pl.BlockSpec((1, tile_b), lambda i: (0, i))

    csize = jnp.dtype(compute_dtype).itemsize
    flops = 2 * B * (ob_dim * H + max(n_layers - 1, 0) * H * H + H)
    transcendentals = n_layers * B * H
    bytes_accessed = (csize * B * ob_dim + 4 * B
                      + sum(int(p.size) * p.dtype.itemsize for p in vmem_params) + 4)

    def _padded_vmem_bytes(p):
        r = _round_up(int(p.shape[0]), 8)
        c = _round_up(int(p.shape[-1]), 128)
        return r * c * p.dtype.itemsize

    vmem_needed = (2 * ob_dim * tile_b * csize          # obs double buffer
                   + 2 * tile_b * 4                     # out double buffer
                   + sum(_padded_vmem_bytes(p) for p in vmem_params))
    # raise v5e's 16 MiB scoped default; stay well under v7x's 64 MiB physical VMEM
    vmem_limit = int(min(48 << 20, max(32 << 20, 2 * vmem_needed)))

    kernel = _make_value_critic_kernel(n_layers, compute_dtype)

    def _call(param_specs):
        return pl.pallas_call(
            kernel,
            out_shape=jax.ShapeDtypeStruct((1, B), jnp.float32),
            grid=grid,
            in_specs=[obs_spec] + param_specs + [smem_spec],
            out_specs=out_spec,
            compiler_params=pltpu.CompilerParams(
                dimension_semantics=("parallel",),
                vmem_limit_bytes=vmem_limit),
            cost_estimate=pl.CostEstimate(
                flops=int(flops),
                transcendentals=int(transcendentals),
                bytes_accessed=int(bytes_accessed)),
        )(obs_cols, *vmem_params, bo_smem)

    try:
        # grid-invariant operands: constant index map + single buffer
        return _call([pl.BlockSpec(p.shape, lambda i: (0, 0),
                                   pipeline_mode=pl.Buffered(1))
                      for p in vmem_params])
    except Exception:
        # fallback for jax builds without per-BlockSpec pipeline_mode support
        return _call([pl.BlockSpec(p.shape, lambda i: (0, 0))
                      for p in vmem_params])


def value_critic_forward(obs, params, **kwargs):
    """PyTorch-convention wrapper: obs (B, ob_dim) -> values (B, 1).

    Prefer value_critic_forward_cols with a column-layout producer: the two
    transposes here are exactly the extra XLA relayout ops the kernel avoids.
    """
    vals = value_critic_forward_cols(obs.T, params, **kwargs)
    return vals.T


def init_params(key, ob_dim, n_layers, layer_size):
    """nn.Linear-style uniform fan-in init; weights (out,in), biases (out,1)."""
    dims = [ob_dim] + [layer_size] * n_layers + [1]
    params = []
    for l in range(len(dims) - 1):
        key, kw, kb = jax.random.split(key, 3)
        fan_in, fan_out = dims[l], dims[l + 1]
        bound = 1.0 / (fan_in ** 0.5)
        w = jax.random.uniform(kw, (fan_out, fan_in), jnp.float32, -bound, bound)
        b = jax.random.uniform(kb, (fan_out, 1), jnp.float32, -bound, bound)
        params.append((w, b))
    return params


def reference_forward(obs, params):
    h = obs
    for (w, b) in params[:-1]:
        h = jnp.tanh(h @ w.T + b.T)
    wo, bo = params[-1]
    return h @ wo.T + bo.T


# TODO(synk): the update() method (Adam optimizer + MSE loss backward step) is a
# training-time op with no single-kernel Pallas equivalent here; only forward().

if __name__ == "__main__":
    ob_dim, n_layers, layer_size = 16, 2, 32

    key = jax.random.PRNGKey(0)
    k1, k2, kp = jax.random.split(key, 3)
    params = init_params(kp, ob_dim, n_layers, layer_size)

    # 1) tiny batch, column layout: single partial 128-lane tile, grid = 1
    obs_cols = jax.random.normal(k1, (ob_dim, 8), jnp.float32)
    vals = jax.block_until_ready(value_critic_forward_cols(obs_cols, params))
    ref = reference_forward(obs_cols.T, params)                 # (8, 1)
    assert vals.shape == (1, 8)
    assert jnp.allclose(vals, ref.T, atol=1e-4, rtol=1e-4), \
        float(jnp.max(jnp.abs(vals - ref.T)))

    # 2) non-multiple-of-tile batch: pl.cdiv grid + masked boundary block, and
    #    the min_grid_steps clamp keeps >= 2 parallel steps (v7x two-TC sharding)
    obs2_cols = jax.random.normal(k2, (ob_dim, 300), jnp.float32)
    vals2 = jax.block_until_ready(value_critic_forward_cols(obs2_cols, params))
    ref2 = reference_forward(obs2_cols.T, params)               # (300, 1)
    assert vals2.shape == (1, 300)
    assert jnp.allclose(vals2, ref2.T, atol=1e-4, rtol=1e-4), \
        float(jnp.max(jnp.abs(vals2 - ref2.T)))

    # 3) bf16 streaming variant (v6e / v7x): f32 MXU accumulation, relaxed tolerance
    vals3 = jax.block_until_ready(
        value_critic_forward_cols(obs2_cols, params, compute_dtype=jnp.bfloat16))
    assert vals3.shape == (1, 300)
    assert jnp.allclose(vals3, ref2.T, atol=5e-2, rtol=5e-2), \
        float(jnp.max(jnp.abs(vals3 - ref2.T)))

    # 4) legacy PyTorch-convention wrapper: (B, ob_dim) -> (B, 1)
    vals4 = jax.block_until_ready(value_critic_forward(obs_cols.T, params))
    assert vals4.shape == (8, 1)
    assert jnp.allclose(vals4, ref, atol=1e-4, rtol=1e-4), \
        float(jnp.max(jnp.abs(vals4 - ref)))

    print("KERNEL_OK")
</pallas_src>

<mosaic_0001>
module attributes {stable_mosaic.version = 11 : i64} {
  func.func @kernel(%arg0: i32, %arg1: memref<16x128xf32, #tpu.memory_space<vmem>>, %arg2: memref<32x16xf32, #tpu.memory_space<vmem>>, %arg3: memref<32x1xf32, #tpu.memory_space<vmem>>, %arg4: memref<32x32xf32, #tpu.memory_space<vmem>>, %arg5: memref<32x1xf32, #tpu.memory_space<vmem>>, %arg6: memref<32x1xf32, #tpu.memory_space<vmem>>, %arg7: memref<1x1xf32, #tpu.memory_space<smem>>, %arg8: memref<1x128xf32, #tpu.memory_space<vmem>>) attributes {dimension_semantics = [#tpu.dimension_semantics<parallel>], iteration_bounds = array<i64: 1>, scalar_prefetch = 0 : i64, scratch_operands = 0 : i64, tpu.core_type = #tpu.core_type<tc>, window_params = [{transform_indices = @transform_0, window_bounds = array<i64: 16, 128>}, {pipeline_mode = #tpu.pipeline_mode<synchronous>, transform_indices = @transform_1, window_bounds = array<i64: 32, 16>}, {pipeline_mode = #tpu.pipeline_mode<synchronous>, transform_indices = @transform_2, window_bounds = array<i64: 32, 1>}, {pipeline_mode = #tpu.pipeline_mode<synchronous>, transform_indices = @transform_3, window_bounds = array<i64: 32, 32>}, {pipeline_mode = #tpu.pipeline_mode<synchronous>, transform_indices = @transform_4, window_bounds = array<i64: 32, 1>}, {pipeline_mode = #tpu.pipeline_mode<synchronous>, transform_indices = @transform_5, window_bounds = array<i64: 32, 1>}, {transform_indices = @transform_6, window_bounds = array<i64: 1, 1>}, {transform_indices = @transform_7, window_bounds = array<i64: 1, 128>}]} {
    %c0 = arith.constant 0 : index
    %c0_0 = arith.constant 0 : index
    %0 = vector.load %arg1[%c0, %c0_0] : memref<16x128xf32, #tpu.memory_space<vmem>>, vector<16x128xf32>
    %c0_1 = arith.constant 0 : index
    %c0_2 = arith.constant 0 : index
    %1 = vector.load %arg2[%c0_1, %c0_2] : memref<32x16xf32, #tpu.memory_space<vmem>>, vector<32x16xf32>
    %c0_3 = arith.constant 0 : index
    %c0_4 = arith.constant 0 : index
    %2 = vector.load %arg3[%c0_3, %c0_4] : memref<32x1xf32, #tpu.memory_space<vmem>>, vector<32x1xf32>
    %cst = arith.constant dense<0.000000e+00> : vector<32x128xf32>
    %3 = tpu.matmul %1, %0, %cst {dimension_numbers = #tpu.dot_dimension_numbers<[1], [0], [0], [1], [0, 0, 1, 1], [], []>} : vector<32x16xf32>, vector<16x128xf32>, vector<32x128xf32> -> vector<32x128xf32>
    %4 = vector.broadcast %2 : vector<32x1xf32> to vector<32x128xf32>
    %5 = arith.addf %3, %4 : vector<32x128xf32>
    %6 = math.tanh %5 : vector<32x128xf32>
    %c0_5 = arith.constant 0 : index
    %c0_6 = arith.constant 0 : index
    %7 = vector.load %arg4[%c0_5, %c0_6] : memref<32x32xf32, #tpu.memory_space<vmem>>, vector<32x32xf32>
    %c0_7 = arith.constant 0 : index
    %c0_8 = arith.constant 0 : index
    %8 = vector.load %arg5[%c0_7, %c0_8] : memref<32x1xf32, #tpu.memory_space<vmem>>, vector<32x1xf32>
    %cst_9 = arith.constant dense<0.000000e+00> : vector<32x128xf32>
    %9 = tpu.matmul %7, %6, %cst_9 {dimension_numbers = #tpu.dot_dimension_numbers<[1], [0], [0], [1], [0, 0, 1, 1], [], []>} : vector<32x32xf32>, vector<32x128xf32>, vector<32x128xf32> -> vector<32x128xf32>
    %10 = vector.broadcast %8 : vector<32x1xf32> to vector<32x128xf32>
    %11 = arith.addf %9, %10 : vector<32x128xf32>
    %12 = math.tanh %11 : vector<32x128xf32>
    %c0_10 = arith.constant 0 : index
    %c0_11 = arith.constant 0 : index
    %13 = vector.load %arg6[%c0_10, %c0_11] : memref<32x1xf32, #tpu.memory_space<vmem>>, vector<32x1xf32>
    %c0_12 = arith.constant 0 : index
    %c0_13 = arith.constant 0 : index
    %14 = memref.load %arg7[%c0_12, %c0_13] : memref<1x1xf32, #tpu.memory_space<smem>>
    %15 = vector.broadcast %13 : vector<32x1xf32> to vector<32x128xf32>
    %16 = arith.mulf %12, %15 : vector<32x128xf32>
    %cst_14 = arith.constant dense<0.000000e+00> : vector<128xf32>
    %17 = vector.multi_reduction <add>, %16, %cst_14 [0] : vector<32x128xf32> to vector<128xf32>
    %18 = vector.shape_cast %17 : vector<128xf32> to vector<1x128xf32>
    %19 = vector.broadcast %14 : f32 to vector<1x128xf32>
    %20 = arith.addf %18, %19 : vector<1x128xf32>
    %c0_15 = arith.constant 0 : index
    %c0_16 = arith.constant 0 : index
    %21 = vector.load %arg8[%c0_15, %c0_16] : memref<1x128xf32, #tpu.memory_space<vmem>>, vector<1x128xf32>
    tpu.vector_store %arg8[%c0_15, %c0_16], %20 {strides = array<i32>} : memref<1x128xf32, #tpu.memory_space<vmem>>, vector<1x128xf32>,
    return
  }
  func.func @transform_0(%arg0: i32) -> (i32, i32) {
    %c0_i32 = arith.constant 0 : i32
    %c0_i32_0 = arith.constant 0 : i32
    return %c0_i32, %arg0 : i32, i32
  }
  func.func @transform_1(%arg0: i32) -> (i32, i32) {
    %c0_i32 = arith.constant 0 : i32
    %c0_i32_0 = arith.constant 0 : i32
    %c0_i32_1 = arith.constant 0 : i32
    return %c0_i32, %c0_i32_0 : i32, i32
  }
  func.func @transform_2(%arg0: i32) -> (i32, i32) {
    %c0_i32 = arith.constant 0 : i32
    %c0_i32_0 = arith.constant 0 : i32
    %c0_i32_1 = arith.constant 0 : i32
    return %c0_i32, %c0_i32_0 : i32, i32
  }
  func.func @transform_3(%arg0: i32) -> (i32, i32) {
    %c0_i32 = arith.constant 0 : i32
    %c0_i32_0 = arith.constant 0 : i32
    %c0_i32_1 = arith.constant 0 : i32
    return %c0_i32, %c0_i32_0 : i32, i32
  }
  func.func @transform_4(%arg0: i32) -> (i32, i32) {
    %c0_i32 = arith.constant 0 : i32
    %c0_i32_0 = arith.constant 0 : i32
    %c0_i32_1 = arith.constant 0 : i32
    return %c0_i32, %c0_i32_0 : i32, i32
  }
  func.func @transform_5(%arg0: i32) -> (i32, i32) {
    %c0_i32 = arith.constant 0 : i32
    %c0_i32_0 = arith.constant 0 : i32
    %c0_i32_1 = arith.constant 0 : i32
    return %c0_i32, %c0_i32_0 : i32, i32
  }
  func.func @transform_6(%arg0: i32) -> (i32, i32) {
    %c0_i32 = arith.constant 0 : i32
    %c0_i32_0 = arith.constant 0 : i32
    %c0_i32_1 = arith.constant 0 : i32
    return %c0_i32, %c0_i32_0 : i32, i32
  }
  func.func @transform_7(%arg0: i32) -> (i32, i32) {
    %c0_i32 = arith.constant 0 : i32
    %c0_i32_0 = arith.constant 0 : i32
    return %c0_i32, %arg0 : i32, i32
  }
}

module attributes {stable_mosaic.version = 11 : i64} {
  func.func @kernel(%arg0: i32, %arg1: memref<16x128xf32, #tpu.memory_space<vmem>>, %arg2: memref<32x16xf32, #tpu.memory_space<vmem>>, %arg3: memref<32x1xf32, #tpu.memory_space<vmem>>, %arg4: memref<32x32xf32, #tpu.memory_space<vmem>>, %arg5: memref<32x1xf32, #tpu.memory_space<vmem>>, %arg6: memref<32x1xf32, #tpu.memory_space<vmem>>, %arg7: memref<1x1xf32, #tpu.memory_space<smem>>, %arg8: memref<1x128xf32, #tpu.memory_space<vmem>>) attributes {dimension_semantics = [#tpu.dimension_semantics<parallel>], iteration_bounds = array<i64: 1>, scalar_prefetch = 0 : i64, scratch_operands = 0 : i64, tpu.core_type = #tpu.core_type<tc>, window_params = [{transform_indices = @transform_0, window_bounds = array<i64: 16, 128>}, {pipeline_mode = #tpu.pipeline_mode<synchronous>, transform_indices = @transform_1, window_bounds = array<i64: 32, 16>}, {pipeline_mode = #tpu.pipeline_mode<synchronous>, transform_indices = @transform_2, window_bounds = array<i64: 32, 1>}, {pipeline_mode = #tpu.pipeline_mode<synchronous>, transform_indices = @transform_3, window_bounds = array<i64: 32, 32>}, {pipeline_mode = #tpu.pipeline_mode<synchronous>, transform_indices = @transform_4, window_bounds = array<i64: 32, 1>}, {pipeline_mode = #tpu.pipeline_mode<synchronous>, transform_indices = @transform_5, window_bounds = array<i64: 32, 1>}, {transform_indices = @transform_6, window_bounds = array<i64: 1, 1>}, {transform_indices = @transform_7, window_bounds = array<i64: 1, 128>}]} {
    %c0 = arith.constant 0 : index
    %c0_0 = arith.constant 0 : index
    %0 = vector.load %arg1[%c0, %c0_0] : memref<16x128xf32, #tpu.memory_space<vmem>>, vector<16x128xf32>
    %c0_1 = arith.constant 0 : index
    %c0_2 = arith.constant 0 : index
    %1 = vector.load %arg2[%c0_1, %c0_2] : memref<32x16xf32, #tpu.memory_space<vmem>>, vector<32x16xf32>
    %c0_3 = arith.constant 0 : index
    %c0_4 = arith.constant 0 : index
    %2 = vector.load %arg3[%c0_3, %c0_4] : memref<32x1xf32, #tpu.memory_space<vmem>>, vector<32x1xf32>
    %cst = arith.constant dense<0.000000e+00> : vector<32x128xf32>
    %3 = tpu.matmul %1, %0, %cst {dimension_numbers = #tpu.dot_dimension_numbers<[1], [0], [0], [1], [0, 0, 1, 1], [], []>} : vector<32x16xf32>, vector<16x128xf32>, vector<32x128xf32> -> vector<32x128xf32>
    %4 = vector.broadcast %2 : vector<32x1xf32> to vector<32x128xf32>
    %5 = arith.addf %3, %4 : vector<32x128xf32>
    %6 = math.tanh %5 : vector<32x128xf32>
    %c0_5 = arith.constant 0 : index
    %c0_6 = arith.constant 0 : index
    %7 = vector.load %arg4[%c0_5, %c0_6] : memref<32x32xf32, #tpu.memory_space<vmem>>, vector<32x32xf32>
    %c0_7 = arith.constant 0 : index
    %c0_8 = arith.constant 0 : index
    %8 = vector.load %arg5[%c0_7, %c0_8] : memref<32x1xf32, #tpu.memory_space<vmem>>, vector<32x1xf32>
    %cst_9 = arith.constant dense<0.000000e+00> : vector<32x128xf32>
    %9 = tpu.matmul %7, %6, %cst_9 {dimension_numbers = #tpu.dot_dimension_numbers<[1], [0], [0], [1], [0, 0, 1, 1], [], []>} : vector<32x32xf32>, vector<32x128xf32>, vector<32x128xf32> -> vector<32x128xf32>
    %10 = vector.broadcast %8 : vector<32x1xf32> to vector<32x128xf32>
    %11 = arith.addf %9, %10 : vector<32x128xf32>
    %12 = math.tanh %11 : vector<32x128xf32>
    %c0_10 = arith.constant 0 : index
    %c0_11 = arith.constant 0 : index
    %13 = vector.load %arg6[%c0_10, %c0_11] : memref<32x1xf32, #tpu.memory_space<vmem>>, vector<32x1xf32>
    %c0_12 = arith.constant 0 : index
    %c0_13 = arith.constant 0 : index
    %14 = memref.load %arg7[%c0_12, %c0_13] : memref<1x1xf32, #tpu.memory_space<smem>>
    %15 = vector.broadcast %13 : vector<32x1xf32> to vector<32x128xf32>
    %16 = arith.mulf %12, %15 : vector<32x128xf32>
    %cst_14 = arith.constant dense<0.000000e+00> : vector<128xf32>
    %17 = vector.multi_reduction <add>, %16, %cst_14 [0] : vector<32x128xf32> to vector<128xf32>
    %18 = vector.shape_cast %17 : vector<128xf32> to vector<1x128xf32>
    %19 = vector.broadcast %14 : f32 to vector<1x128xf32>
    %20 = arith.addf %18, %19 : vector<1x128xf32>
    %c0_15 = arith.constant 0 : index
    %c0_16 = arith.constant 0 : index
    %21 = vector.load %arg8[%c0_15, %c0_16] : memref<1x128xf32, #tpu.memory_space<vmem>>, vector<1x128xf32>
    tpu.vector_store %arg8[%c0_15, %c0_16], %20 {strides = array<i32>} : memref<1x128xf32, #tpu.memory_space<vmem>>, vector<1x128xf32>,
    return
  }
  func.func @transform_0(%arg0: i32) -> (i32, i32) {
    %c0_i32 = arith.constant 0 : i32
    %c0_i32_0 = arith.constant 0 : i32
    return %c0_i32, %arg0 : i32, i32
  }
  func.func @transform_1(%arg0: i32) -> (i32, i32) {
    %c0_i32 = arith.constant 0 : i32
    %c0_i32_0 = arith.constant 0 : i32
    %c0_i32_1 = arith.constant 0 : i32
    return %c0_i32, %c0_i32_0 : i32, i32
  }
  func.func @transform_2(%arg0: i32) -> (i32, i32) {
    %c0_i32 = arith.constant 0 : i32
    %c0_i32_0 = arith.constant 0 : i32
    %c0_i32_1 = arith.constant 0 : i32
    return %c0_i32, %c0_i32_0 : i32, i32
  }
  func.func @transform_3(%arg0: i32) -> (i32, i32) {
    %c0_i32 = arith.constant 0 : i32
    %c0_i32_0 = arith.constant 0 : i32
    %c0_i32_1 = arith.constant 0 : i32
    return %c0_i32, %c0_i32_0 : i32, i32
  }
  func.func @transform_4(%arg0: i32) -> (i32, i32) {
    %c0_i32 = arith.constant 0 : i32
    %c0_i32_0 = arith.constant 0 : i32
    %c0_i32_1 = arith.constant 0 : i32
    return %c0_i32, %c0_i32_0 : i32, i32
  }
  func.func @transform_5(%arg0: i32) -> (i32, i32) {
    %c0_i32 = arith.constant 0 : i32
    %c0_i32_0 = arith.constant 0 : i32
    %c0_i32_1 = arith.constant 0 : i32
    return %c0_i32, %c0_i32_0 : i32, i32
  }
  func.func @transform_6(%arg0: i32) -> (i32, i32) {
    %c0_i32 = arith.constant 0 : i32
    %c0_i32_0 = arith.constant 0 : i32
    %c0_i32_1 = arith.constant 0 : i32
    return %c0_i32, %c0_i32_0 : i32, i32
  }
  func.func @transform_7(%arg0: i32) -> (i32, i32) {
    %c0_i32 = arith.constant 0 : i32
    %c0_i32_0 = arith.constant 0 : i32
    return %c0_i32, %arg0 : i32, i32
  }
}

</mosaic_0001>

<llo_original>
// kernel: tpu_custom_call.1
$region0: #{tpu_custom_call.1}
  #allocation0 [shape = 'u32[]', space=smem, size = 0x4, offset = 0x4, fixed_abs, tag = 'smem constant byte address 0x4 - core index']
  #allocation1 [shape = 'u32[144,128]{1,0:T(1,128)}', space=vmem, size = 0x12000, scoped, tag = 'internal scratch']
  #allocation2 [shape = 'f32[1,1]{1,0:T(1,128)S(6)}', space=smem, size = 0x200, scoped, tag = 'scoped memory for tpu_custom_call.1']
  %s0 = inlined_call_operand.vmem [shape: f32[16,8], index: 0, kind: input, shape index: {}]
  %s1 = inlined_call_operand.vmem [shape: f32[32,16], index: 1, kind: input, shape index: {}]
  %s2 = inlined_call_operand.vmem [shape: f32[32,1], index: 2, kind: input, shape index: {}]
  %s3 = inlined_call_operand.vmem [shape: f32[32,32], index: 3, kind: input, shape index: {}]
  %s4 = inlined_call_operand.vmem [shape: f32[32,1], index: 4, kind: input, shape index: {}]
  %s5 = inlined_call_operand.vmem [shape: f32[32,1], index: 5, kind: input, shape index: {}]
  %s6 = inlined_call_operand.<no memory space> [shape: f32[1,1], index: 6, kind: input, shape index: {}]
  %s7 = inlined_call_operand.hbm [shape: f32[1,8], index: 7, kind: output, shape index: {}]
  %s8 = sld [smem:[#allocation0]]
  $region38: #{tpu_custom_call.1} parent=0
    _
  %s10 = ssub.s32 1, %s8
  %s11 = scalar_select 0, %s10, %s8
  %12 = sst [smem:[#allocation2]] %s6
  $region1: #{tpu_custom_call.1} parent=0
    #allocation3 [shape = 'u8[512]{0}', space=vmem, size = 0x400, scoped, tag = 'output window, operand 0, single buffered']
    #allocation4 [shape = 's32[1]{0}', space=sflag, size = 0x4, scoped, tag = 'scoped memory for tpu_custom_call.1']
    %13 = vsyncpa [#allocation4], 0
    // Predicated region
    $region2: #{tpu_custom_call.1} parent=1 // pred_check
      _
    $region3: #{tpu_custom_call.1} parent=1 // pred_check_branch
      %15 = sbr.rel (0) target = $region5
    $region4: #{tpu_custom_call.1} parent=1 // pred_region
      _
    $region5: #{tpu_custom_call.1} parent=1 // pred_fallthru
      _
    // Predicated region
    $region6: #{tpu_custom_call.1} parent=1 // pred_check
      _
    $region7: #{tpu_custom_call.1} parent=1 // pred_check_branch
      %17 = sbr.rel (0) target = $region9
    $region8: #{tpu_custom_call.1} parent=1 // pred_region
      _
    $region9: #{tpu_custom_call.1} parent=1 // pred_fallthru
      _
    // Predicated region
    $region10: #{tpu_custom_call.1} parent=1 // pred_check
      _
    $region11: #{tpu_custom_call.1} parent=1 // pred_check_branch
      %19 = sbr.rel (0) target = $region13
    $region12: #{tpu_custom_call.1} parent=1 // pred_region
      _
    $region13: #{tpu_custom_call.1} parent=1 // pred_fallthru
      _
    // Predicated region
    $region14: #{tpu_custom_call.1} parent=1 // pred_check
      _
    $region15: #{tpu_custom_call.1} parent=1 // pred_check_branch
      %21 = sbr.rel (0) target = $region17
    $region16: #{tpu_custom_call.1} parent=1 // pred_region
      _
    $region17: #{tpu_custom_call.1} parent=1 // pred_fallthru
      _
    // Predicated region
    $region18: #{tpu_custom_call.1} parent=1 // pred_check
      _
    $region19: #{tpu_custom_call.1} parent=1 // pred_check_branch
      %23 = sbr.rel (0) target = $region21
    $region20: #{tpu_custom_call.1} parent=1 // pred_region
      _
    $region21: #{tpu_custom_call.1} parent=1 // pred_fallthru
      _
    // Predicated region
    $region22: #{tpu_custom_call.1} parent=1 // pred_check
      _
    $region23: #{tpu_custom_call.1} parent=1 // pred_check_branch
      %25 = sbr.rel (0) target = $region25
    $region24: #{tpu_custom_call.1} parent=1 // pred_region
      _
    $region25: #{tpu_custom_call.1} parent=1 // pred_fallthru
      _
    // Predicated region
    $region26: #{tpu_custom_call.1} parent=1 // pred_check
      _
    $region27: #{tpu_custom_call.1} parent=1 // pred_check_branch
      %27 = sbr.rel (0) target = $region29
    $region28: #{tpu_custom_call.1} parent=1 // pred_region
      _
    $region29: #{tpu_custom_call.1} parent=1 // pred_fallthru
      _
    %v28 = vld [vmem:[%s0] sm:$0xff]
    %v29 = vld [vmem:[%s0 + $0x8] sm:$0xff]
    %v30 = vld [vmem:[%s1] sm:$0xff]
    %v31 = vld [vmem:[%s1 + $0x8] sm:$0xff]
    %v32 = vld [vmem:[%s1 + $0x10] sm:$0xff]
    %v33 = vld [vmem:[%s1 + $0x18] sm:$0xff]
    %v34 = vld [vmem:[%s2] sm:$0xff]
    %v35 = vld [vmem:[%s2 + $0x8] sm:$0xff]
    %v36 = vld [vmem:[%s2 + $0x10] sm:$0xff]
    %v37 = vld [vmem:[%s2 + $0x18] sm:$0xff]
    %39 = vset.pattern.permute.xlu0 0
    %40 = vperm.xlu0 %39, %v34
    %v41 = vpop.permute.xlu0 %40
    %44 = vset.pattern.permute.xlu0 0
    %45 = vperm.xlu0 %44, %v35
    %v46 = vpop.permute.xlu0 %45
    %49 = vset.pattern.permute.xlu0 0
    %50 = vperm.xlu0 %49, %v36
    %v51 = vpop.permute.xlu0 %50
    %54 = vset.pattern.permute.xlu0 0
    %55 = vperm.xlu0 %54, %v37
    %v56 = vpop.permute.xlu0 %55
    %vm58 = vcmask 130048
    %v60 = vsel %vm58, %v30, 0
    %v63 = vsel %vm58, %v31, 0
    %v66 = vsel %vm58, %v32, 0
    %v69 = vsel %vm58, %v33, 0
    %71 = vmatprep.subr.mxu0 0.0
    %72 = vmatpush1.msra.mxu0 0.0
    %73 = vmatprep.subr.mxu0 0.0
    %74 = vmatpush1.msra.mxu0 0.0
    %75 = vmatprep.subr.mxu0 0.0
    %76 = vmatpush1.msra.mxu0 0.0
    %77 = vmatprep.subr.mxu0 0.0
    %78 = vmatpush1.msra.mxu0 0.0
    %79 = vmatprep.subr.mxu0 0.0
    %80 = vmatpush1.msra.mxu0 0.0
    %81 = vmatprep.subr.mxu0 0.0
    %82 = vmatpush1.msra.mxu0 0.0
    %83 = vmatprep.subr.mxu0 0.0
    %84 = vmatpush1.msra.mxu0 0.0
    %85 = vmatprep.subr.mxu0 0.0
    %86 = vmatpush1.msra.mxu0 0.0
    %87 = vmatprep.subr.mxu0 0.0
    %88 = vmatpush1.msra.mxu0 0.0
    %89 = vmatprep.subr.mxu0 0.0
    %90 = vmatpush1.msra.mxu0 0.0
    %91 = vmatprep.subr.mxu0 0.0
    %92 = vmatpush1.msra.mxu0 0.0
    %93 = vmatprep.subr.mxu0 0.0
    %94 = vmatpush1.msra.mxu0 0.0
    %95 = vmatprep.subr.mxu0 0.0
    %96 = vmatpush1.msra.mxu0 0.0
    %97 = vmatprep.subr.mxu0 0.0
    %98 = vmatpush1.msra.mxu0 0.0
    %99 = vmatprep.subr.mxu0 0.0
    %100 = vmatpush1.msra.mxu0 %v29
    %101 = vmatprep.subr.mxu0 0.0
    %102 = vmatpush1.msra.mxu0 %v28
    %103 = vmatprep.subr.mxu0 0.0
    %104 = vmatpush2.msra.mxu0 0.0
    %105 = vmatprep.subr.mxu0 0.0
    %106 = vmatpush2.msra.mxu0 0.0
    %107 = vmatprep.subr.mxu0 0.0
    %108 = vmatpush2.msra.mxu0 0.0
    %109 = vmatprep.subr.mxu0 0.0
    %110 = vmatpush2.msra.mxu0 0.0
    %111 = vmatprep.subr.mxu0 0.0
    %112 = vmatpush2.msra.mxu0 0.0
    %113 = vmatprep.subr.mxu0 0.0
    %114 = vmatpush2.msra.mxu0 0.0
    %115 = vmatprep.subr.mxu0 0.0
    %116 = vmatpush2.msra.mxu0 0.0
    %117 = vmatprep.subr.mxu0 0.0
    %118 = vmatpush2.msra.mxu0 0.0
    %119 = vmatprep.subr.mxu0 0.0
    %120 = vmatpush2.msra.mxu0 0.0
    %121 = vmatprep.subr.mxu0 0.0
    %122 = vmatpush2.msra.mxu0 0.0
    %123 = vmatprep.subr.mxu0 0.0
    %124 = vmatpush2.msra.mxu0 0.0
    %125 = vmatprep.subr.mxu0 0.0
    %126 = vmatpush2.msra.mxu0 0.0
    %127 = vmatprep.subr.mxu0 0.0
    %128 = vmatpush2.msra.mxu0 0.0
    %129 = vmatprep.subr.mxu0 0.0
    %130 = vmatpush2.msra.mxu0 0.0
    %131 = vmatprep.subr.mxu0 0.0
    %132 = vmatpush2.msra.mxu0 0.0
    %133 = vmatprep.subr.mxu0 0.0
    %134 = vmatpush2.msra.mxu0 0.0
    %135 = vmatprep.mubr.f32.mxu0 0.0
    %136 = vmatmul.mubr.f32.gmra.mxu0 %v60
    %v137 = vpop.f32.mrf.mxu0
    %v138 = vadd.f32 %v41, %v137
    %v139 = vpop.f32.mrf.mxu0
    %140 = vmatprep.mubr.f32.mxu0 0.0
    %141 = vmatmul.mubr.f32.gmra.mxu0 %v63
    %v142 = vpop.f32.mrf.mxu0
    %v143 = vadd.f32 %v46, %v142
    %v144 = vpop.f32.mrf.mxu0
    %145 = vmatprep.mubr.f32.mxu0 0.0
    %146 = vmatmul.mubr.f32.gmra.mxu0 %v66
    %v147 = vpop.f32.mrf.mxu0
    %v148 = vadd.f32 %v51, %v147
    %v149 = vpop.f32.mrf.mxu0
    %150 = vmatprep.mubr.f32.mxu0 0.0
    %151 = vmatmul.mubr.f32.gmra.mxu0 %v69
    %v152 = vpop.f32.mrf.mxu0
    %v153 = vadd.f32 %v56, %v152
    %v154 = vpop.f32.mrf.mxu0
    %155 = vdwg.mxu0
    %v156 = vtanh.pop %v138
    %v157 = vtanh.pop %v143
    %v158 = vtanh.pop %v148
    %v159 = vtanh.pop %v153
    %v160 = vld [vmem:[%s3] sm:$0xff]
    %v161 = vld [vmem:[%s3 + $0x8] sm:$0xff]
    %v162 = vld [vmem:[%s3 + $0x10] sm:$0xff]
    %v163 = vld [vmem:[%s3 + $0x18] sm:$0xff]
    %v164 = vld [vmem:[%s4] sm:$0xff]
    %v165 = vld [vmem:[%s4 + $0x8] sm:$0xff]
    %v166 = vld [vmem:[%s4 + $0x10] sm:$0xff]
    %v167 = vld [vmem:[%s4 + $0x18] sm:$0xff]
    %169 = vset.pattern.permute.xlu0 0
    %170 = vperm.xlu0 %169, %v164
    %v171 = vpop.permute.xlu0 %170
    %174 = vset.pattern.permute.xlu0 0
    %175 = vperm.xlu0 %174, %v165
    %v176 = vpop.permute.xlu0 %175
    %179 = vset.pattern.permute.xlu0 0
    %180 = vperm.xlu0 %179, %v166
    %v181 = vpop.permute.xlu0 %180
    %184 = vset.pattern.permute.xlu0 0
    %185 = vperm.xlu0 %184, %v167
    %v186 = vpop.permute.xlu0 %185
    %vm188 = vcmask 261120
    %v190 = vsel %vm188, %v160, 0
    %v193 = vsel %vm188, %v161, 0
    %v196 = vsel %vm188, %v162, 0
    %v199 = vsel %vm188, %v163, 0
    %201 = vmatprep.subr.mxu0 0.0
    %202 = vmatpush1.msra.mxu0 0.0
    %203 = vmatprep.subr.mxu0 0.0
    %204 = vmatpush1.msra.mxu0 0.0
    %205 = vmatprep.subr.mxu0 0.0
    %206 = vmatpush1.msra.mxu0 0.0
    %207 = vmatprep.subr.mxu0 0.0
    %208 = vmatpush1.msra.mxu0 0.0
    %209 = vmatprep.subr.mxu0 0.0
    %210 = vmatpush1.msra.mxu0 0.0
    %211 = vmatprep.subr.mxu0 0.0
    %212 = vmatpush1.msra.mxu0 0.0
    %213 = vmatprep.subr.mxu0 0.0
    %214 = vmatpush1.msra.mxu0 0.0
    %215 = vmatprep.subr.mxu0 0.0
    %216 = vmatpush1.msra.mxu0 0.0
    %217 = vmatprep.subr.mxu0 0.0
    %218 = vmatpush1.msra.mxu0 0.0
    %219 = vmatprep.subr.mxu0 0.0
    %220 = vmatpush1.msra.mxu0 0.0
    %221 = vmatprep.subr.mxu0 0.0
    %222 = vmatpush1.msra.mxu0 0.0
    %223 = vmatprep.subr.mxu0 0.0
    %224 = vmatpush1.msra.mxu0 0.0
    %225 = vmatprep.subr.mxu0 0.0
    %226 = vmatpush1.msra.mxu0 %v159
    %227 = vmatprep.subr.mxu0 0.0
    %228 = vmatpush1.msra.mxu0 %v158
    %229 = vmatprep.subr.mxu0 0.0
    %230 = vmatpush1.msra.mxu0 %v157
    %231 = vmatprep.subr.mxu0 0.0
    %232 = vmatpush1.msra.mxu0 %v156
    %233 = vmatprep.subr.mxu0 0.0
    %234 = vmatpush2.msra.mxu0 0.0
    %235 = vmatprep.subr.mxu0 0.0
    %236 = vmatpush2.msra.mxu0 0.0
    %237 = vmatprep.subr.mxu0 0.0
    %238 = vmatpush2.msra.mxu0 0.0
    %239 = vmatprep.subr.mxu0 0.0
    %240 = vmatpush2.msra.mxu0 0.0
    %241 = vmatprep.subr.mxu0 0.0
    %242 = vmatpush2.msra.mxu0 0.0
    %243 = vmatprep.subr.mxu0 0.0
    %244 = vmatpush2.msra.mxu0 0.0
    %245 = vmatprep.subr.mxu0 0.0
    %246 = vmatpush2.msra.mxu0 0.0
    %247 = vmatprep.subr.mxu0 0.0
    %248 = vmatpush2.msra.mxu0 0.0
    %249 = vmatprep.subr.mxu0 0.0
    %250 = vmatpush2.msra.mxu0 0.0
    %251 = vmatprep.subr.mxu0 0.0
    %252 = vmatpush2.msra.mxu0 0.0
    %253 = vmatprep.subr.mxu0 0.0
    %254 = vmatpush2.msra.mxu0 0.0
    %255 = vmatprep.subr.mxu0 0.0
    %256 = vmatpush2.msra.mxu0 0.0
    %257 = vmatprep.subr.mxu0 0.0
    %258 = vmatpush2.msra.mxu0 0.0
    %259 = vmatprep.subr.mxu0 0.0
    %260 = vmatpush2.msra.mxu0 0.0
    %261 = vmatprep.subr.mxu0 0.0
    %262 = vmatpush2.msra.mxu0 0.0
    %263 = vmatprep.subr.mxu0 0.0
    %264 = vmatpush2.msra.mxu0 0.0
    %265 = vmatprep.mubr.f32.mxu0 0.0
    %266 = vmatmul.mubr.f32.gmra.mxu0 %v190
    %v267 = vpop.f32.mrf.mxu0
    %v268 = vadd.f32 %v171, %v267
    %v269 = vpop.f32.mrf.mxu0
    %270 = vmatprep.mubr.f32.mxu0 0.0
    %271 = vmatmul.mubr.f32.gmra.mxu0 %v193
    %v272 = vpop.f32.mrf.mxu0
    %v273 = vadd.f32 %v176, %v272
    %v274 = vpop.f32.mrf.mxu0
    %275 = vmatprep.mubr.f32.mxu0 0.0
    %276 = vmatmul.mubr.f32.gmra.mxu0 %v196
    %v277 = vpop.f32.mrf.mxu0
    %v278 = vadd.f32 %v181, %v277
    %v279 = vpop.f32.mrf.mxu0
    %280 = vmatprep.mubr.f32.mxu0 0.0
    %281 = vmatmul.mubr.f32.gmra.mxu0 %v199
    %v282 = vpop.f32.mrf.mxu0
    %v283 = vadd.f32 %v186, %v282
    %v284 = vpop.f32.mrf.mxu0
    %285 = vdwg.mxu0
    %v286 = vtanh.pop %v268
    %v287 = vtanh.pop %v273
    %v288 = vtanh.pop %v278
    %v289 = vtanh.pop %v283
    %v290 = vld [vmem:[%s5] sm:$0xff]
    %v291 = vld [vmem:[%s5 + $0x8] sm:$0xff]
    %v292 = vld [vmem:[%s5 + $0x10] sm:$0xff]
    %v293 = vld [vmem:[%s5 + $0x18] sm:$0xff]
    %s294 = sld [smem:[#allocation2]]
    %296 = vset.pattern.permute.xlu0 0
    %297 = vperm.xlu0 %296, %v290
    %v298 = vpop.permute.xlu0 %297
    %301 = vset.pattern.permute.xlu0 0
    %302 = vperm.xlu0 %301, %v291
    %v303 = vpop.permute.xlu0 %302
    %306 = vset.pattern.permute.xlu0 0
    %307 = vperm.xlu0 %306, %v292
    %v308 = vpop.permute.xlu0 %307
    %311 = vset.pattern.permute.xlu0 0
    %312 = vperm.xlu0 %311, %v293
    %v313 = vpop.permute.xlu0 %312
    %v315 = vmul.f32 %v286, %v298
    %v316 = vmul.f32 %v287, %v303
    %v317 = vmul.f32 %v288, %v308
    %v318 = vmul.f32 %v289, %v313
    %v319 = vadd.f32 %v315, %v316
    %v320 = vadd.f32 %v319, %v317
    %v321 = vadd.f32 %v320, %v318
    %v322 = vrot.slane %v321, 4
    %v323 = vadd.f32 %v321, %v322
    %v324 = vrot.slane %v323, 2
    %v325 = vadd.f32 %v323, %v324
    %v326 = vrot.slane %v325, 1
    %v327 = vadd.f32 %v325, %v326
    %v328 = vstv %s294
    %v329 = vadd.f32 %v327, %v328
    %330 = vst [vmem:[#allocation3] sm:$0x1] %v329
    // Predicated region
    $region30: #{tpu_custom_call.1} parent=1 // pred_check
      _
    $region31: #{tpu_custom_call.1} parent=1 // pred_check_branch
      %332 = sbr.rel (0) target = $region33
    $region32: #{tpu_custom_call.1} parent=1 // pred_region
      %s334 = ssub.s32 16, 16
      %335 = vsyncadd [#allocation4], %s334
      %s337 = sshll.u32 [#allocation3], 4
      %s338 = int_to_ptr.vmem [resolvable:$true] %s337
      %340 = dma.vmem_to_hbm [thread:$0]  %s338, 16, %s7, [#allocation4]
    $region33: #{tpu_custom_call.1} parent=1 // pred_fallthru
      _
    // Predicated region
    $region34: #{tpu_custom_call.1} parent=1 // pred_check
      _
    $region35: #{tpu_custom_call.1} parent=1 // pred_check_branch
      %342 = sbr.rel (0) target = $region37
    $region36: #{tpu_custom_call.1} parent=1 // pred_region
      %343 = dma.done [#allocation4], 16
    $region37: #{tpu_custom_call.1} parent=1 // pred_fallthru
      _
    %344 = vsyncpa [#allocation4], 1

// kernel: tpu_custom_call.1
$region0: #{tpu_custom_call.1}
  #allocation0 [shape = 'u32[]', space=smem, size = 0x4, offset = 0x4, fixed_abs, tag = 'smem constant byte address 0x4 - core index']
  #allocation1 [shape = 'u32[144,128]{1,0:T(1,128)}', space=vmem, size = 0x12000, scoped, tag = 'internal scratch']
  #allocation2 [shape = 'f32[1,1]{1,0:T(1,128)S(6)}', space=smem, size = 0x200, scoped, tag = 'scoped memory for tpu_custom_call.1']
  %s0 = inlined_call_operand.vmem [shape: f32[16,8], index: 0, kind: input, shape index: {}]
  %s1 = inlined_call_operand.vmem [shape: f32[32,16], index: 1, kind: input, shape index: {}]
  %s2 = inlined_call_operand.vmem [shape: f32[32,1], index: 2, kind: input, shape index: {}]
  %s3 = inlined_call_operand.vmem [shape: f32[32,32], index: 3, kind: input, shape index: {}]
  %s4 = inlined_call_operand.vmem [shape: f32[32,1], index: 4, kind: input, shape index: {}]
  %s5 = inlined_call_operand.vmem [shape: f32[32,1], index: 5, kind: input, shape index: {}]
  %s6 = inlined_call_operand.<no memory space> [shape: f32[1,1], index: 6, kind: input, shape index: {}]
  %s7 = inlined_call_operand.hbm [shape: f32[1,8], index: 7, kind: output, shape index: {}]
  %s8 = sld [smem:[#allocation0]]
  $region38: #{tpu_custom_call.1} parent=0
    _
  %s10 = ssub.s32 1, %s8
  %s11 = scalar_select 0, %s10, %s8
  %12 = sst [smem:[#allocation2]] %s6
  $region1: #{tpu_custom_call.1} parent=0
    #allocation3 [shape = 'u8[512]{0}', space=vmem, size = 0x400, scoped, tag = 'output window, operand 0, single buffered']
    #allocation4 [shape = 's32[1]{0}', space=sflag, size = 0x4, scoped, tag = 'scoped memory for tpu_custom_call.1']
    %13 = vsyncpa [#allocation4], 0
    // Predicated region
    $region2: #{tpu_custom_call.1} parent=1 // pred_check
      _
    $region3: #{tpu_custom_call.1} parent=1 // pred_check_branch
      %15 = sbr.rel (0) target = $region5
    $region4: #{tpu_custom_call.1} parent=1 // pred_region
      _
    $region5: #{tpu_custom_call.1} parent=1 // pred_fallthru
      _
    // Predicated region
    $region6: #{tpu_custom_call.1} parent=1 // pred_check
      _
    $region7: #{tpu_custom_call.1} parent=1 // pred_check_branch
      %17 = sbr.rel (0) target = $region9
    $region8: #{tpu_custom_call.1} parent=1 // pred_region
      _
    $region9: #{tpu_custom_call.1} parent=1 // pred_fallthru
      _
    // Predicated region
    $region10: #{tpu_custom_call.1} parent=1 // pred_check
      _
    $region11: #{tpu_custom_call.1} parent=1 // pred_check_branch
      %19 = sbr.rel (0) target = $region13
    $region12: #{tpu_custom_call.1} parent=1 // pred_region
      _
    $region13: #{tpu_custom_call.1} parent=1 // pred_fallthru
      _
    // Predicated region
    $region14: #{tpu_custom_call.1} parent=1 // pred_check
      _
    $region15: #{tpu_custom_call.1} parent=1 // pred_check_branch
      %21 = sbr.rel (0) target = $region17
    $region16: #{tpu_custom_call.1} parent=1 // pred_region
      _
    $region17: #{tpu_custom_call.1} parent=1 // pred_fallthru
      _
    // Predicated region
    $region18: #{tpu_custom_call.1} parent=1 // pred_check
      _
    $region19: #{tpu_custom_call.1} parent=1 // pred_check_branch
      %23 = sbr.rel (0) target = $region21
    $region20: #{tpu_custom_call.1} parent=1 // pred_region
      _
    $region21: #{tpu_custom_call.1} parent=1 // pred_fallthru
      _
    // Predicated region
    $region22: #{tpu_custom_call.1} parent=1 // pred_check
      _
    $region23: #{tpu_custom_call.1} parent=1 // pred_check_branch
      %25 = sbr.rel (0) target = $region25
    $region24: #{tpu_custom_call.1} parent=1 // pred_region
      _
    $region25: #{tpu_custom_call.1} parent=1 // pred_fallthru
      _
    // Predicated region
    $region26: #{tpu_custom_call.1} parent=1 // pred_check
      _
    $region27: #{tpu_custom_call.1} parent=1 // pred_check_branch
      %27 = sbr.rel (0) target = $region29
    $region28: #{tpu_custom_call.1} parent=1 // pred_region
      _
    $region29: #{tpu_custom_call.1} parent=1 // pred_fallthru
      _
    %v28 = vld [vmem:[%s0] sm:$0xff]
    %v29 = vld [vmem:[%s0 + $0x8] sm:$0xff]
    %v30 = vld [vmem:[%s1] sm:$0xff]
    %v31 = vld [vmem:[%s1 + $0x8] sm:$0xff]
    %v32 = vld [vmem:[%s1 + $0x10] sm:$0xff]
    %v33 = vld [vmem:[%s1 + $0x18] sm:$0xff]
    %v34 = vld [vmem:[%s2] sm:$0xff]
    %v35 = vld [vmem:[%s2 + $0x8] sm:$0xff]
    %v36 = vld [vmem:[%s2 + $0x10] sm:$0xff]
    %v37 = vld [vmem:[%s2 + $0x18] sm:$0xff]
    %39 = vset.pattern.permute.xlu0 0
    %40 = vperm.xlu0 %39, %v34
    %v41 = vpop.permute.xlu0 %40
    %44 = vset.pattern.permute.xlu0 0
    %45 = vperm.xlu0 %44, %v35
    %v46 = vpop.permute.xlu0 %45
    %49 = vset.pattern.permute.xlu0 0
    %50 = vperm.xlu0 %49, %v36
    %v51 = vpop.permute.xlu0 %50
    %54 = vset.pattern.permute.xlu0 0
    %55 = vperm.xlu0 %54, %v37
    %v56 = vpop.permute.xlu0 %55
    %vm58 = vcmask 130048
    %v60 = vsel %vm58, %v30, 0
    %v63 = vsel %vm58, %v31, 0
    %v66 = vsel %vm58, %v32, 0
    %v69 = vsel %vm58, %v33, 0
    %71 = vmatprep.subr.mxu0 0.0
    %72 = vmatpush1.msra.mxu0 0.0
    %73 = vmatprep.subr.mxu0 0.0
    %74 = vmatpush1.msra.mxu0 0.0
    %75 = vmatprep.subr.mxu0 0.0
    %76 = vmatpush1.msra.mxu0 0.0
    %77 = vmatprep.subr.mxu0 0.0
    %78 = vmatpush1.msra.mxu0 0.0
    %79 = vmatprep.subr.mxu0 0.0
    %80 = vmatpush1.msra.mxu0 0.0
    %81 = vmatprep.subr.mxu0 0.0
    %82 = vmatpush1.msra.mxu0 0.0
    %83 = vmatprep.subr.mxu0 0.0
    %84 = vmatpush1.msra.mxu0 0.0
    %85 = vmatprep.subr.mxu0 0.0
    %86 = vmatpush1.msra.mxu0 0.0
    %87 = vmatprep.subr.mxu0 0.0
    %88 = vmatpush1.msra.mxu0 0.0
    %89 = vmatprep.subr.mxu0 0.0
    %90 = vmatpush1.msra.mxu0 0.0
    %91 = vmatprep.subr.mxu0 0.0
    %92 = vmatpush1.msra.mxu0 0.0
    %93 = vmatprep.subr.mxu0 0.0
    %94 = vmatpush1.msra.mxu0 0.0
    %95 = vmatprep.subr.mxu0 0.0
    %96 = vmatpush1.msra.mxu0 0.0
    %97 = vmatprep.subr.mxu0 0.0
    %98 = vmatpush1.msra.mxu0 0.0
    %99 = vmatprep.subr.mxu0 0.0
    %100 = vmatpush1.msra.mxu0 %v29
    %101 = vmatprep.subr.mxu0 0.0
    %102 = vmatpush1.msra.mxu0 %v28
    %103 = vmatprep.subr.mxu0 0.0
    %104 = vmatpush2.msra.mxu0 0.0
    %105 = vmatprep.subr.mxu0 0.0
    %106 = vmatpush2.msra.mxu0 0.0
    %107 = vmatprep.subr.mxu0 0.0
    %108 = vmatpush2.msra.mxu0 0.0
    %109 = vmatprep.subr.mxu0 0.0
    %110 = vmatpush2.msra.mxu0 0.0
    %111 = vmatprep.subr.mxu0 0.0
    %112 = vmatpush2.msra.mxu0 0.0
    %113 = vmatprep.subr.mxu0 0.0
    %114 = vmatpush2.msra.mxu0 0.0
    %115 = vmatprep.subr.mxu0 0.0
    %116 = vmatpush2.msra.mxu0 0.0
    %117 = vmatprep.subr.mxu0 0.0
    %118 = vmatpush2.msra.mxu0 0.0
    %119 = vmatprep.subr.mxu0 0.0
    %120 = vmatpush2.msra.mxu0 0.0
    %121 = vmatprep.subr.mxu0 0.0
    %122 = vmatpush2.msra.mxu0 0.0
    %123 = vmatprep.subr.mxu0 0.0
    %124 = vmatpush2.msra.mxu0 0.0
    %125 = vmatprep.subr.mxu0 0.0
    %126 = vmatpush2.msra.mxu0 0.0
    %127 = vmatprep.subr.mxu0 0.0
    %128 = vmatpush2.msra.mxu0 0.0
    %129 = vmatprep.subr.mxu0 0.0
    %130 = vmatpush2.msra.mxu0 0.0
    %131 = vmatprep.subr.mxu0 0.0
    %132 = vmatpush2.msra.mxu0 0.0
    %133 = vmatprep.subr.mxu0 0.0
    %134 = vmatpush2.msra.mxu0 0.0
    %135 = vmatprep.mubr.f32.mxu0 0.0
    %136 = vmatmul.mubr.f32.gmra.mxu0 %v60
    %v137 = vpop.f32.mrf.mxu0
    %v138 = vadd.f32 %v41, %v137
    %v139 = vpop.f32.mrf.mxu0
    %140 = vmatprep.mubr.f32.mxu0 0.0
    %141 = vmatmul.mubr.f32.gmra.mxu0 %v63
    %v142 = vpop.f32.mrf.mxu0
    %v143 = vadd.f32 %v46, %v142
    %v144 = vpop.f32.mrf.mxu0
    %145 = vmatprep.mubr.f32.mxu0 0.0
    %146 = vmatmul.mubr.f32.gmra.mxu0 %v66
    %v147 = vpop.f32.mrf.mxu0
    %v148 = vadd.f32 %v51, %v147
    %v149 = vpop.f32.mrf.mxu0
    %150 = vmatprep.mubr.f32.mxu0 0.0
    %151 = vmatmul.mubr.f32.gmra.mxu0 %v69
    %v152 = vpop.f32.mrf.mxu0
    %v153 = vadd.f32 %v56, %v152
    %v154 = vpop.f32.mrf.mxu0
    %155 = vdwg.mxu0
    %v156 = vtanh.pop %v138
    %v157 = vtanh.pop %v143
    %v158 = vtanh.pop %v148
    %v159 = vtanh.pop %v153
    %v160 = vld [vmem:[%s3] sm:$0xff]
    %v161 = vld [vmem:[%s3 + $0x8] sm:$0xff]
    %v162 = vld [vmem:[%s3 + $0x10] sm:$0xff]
    %v163 = vld [vmem:[%s3 + $0x18] sm:$0xff]
    %v164 = vld [vmem:[%s4] sm:$0xff]
    %v165 = vld [vmem:[%s4 + $0x8] sm:$0xff]
    %v166 = vld [vmem:[%s4 + $0x10] sm:$0xff]
    %v167 = vld [vmem:[%s4 + $0x18] sm:$0xff]
    %169 = vset.pattern.permute.xlu0 0
    %170 = vperm.xlu0 %169, %v164
    %v171 = vpop.permute.xlu0 %170
    %174 = vset.pattern.permute.xlu0 0
    %175 = vperm.xlu0 %174, %v165
    %v176 = vpop.permute.xlu0 %175
    %179 = vset.pattern.permute.xlu0 0
    %180 = vperm.xlu0 %179, %v166
    %v181 = vpop.permute.xlu0 %180
    %184 = vset.pattern.permute.xlu0 0
    %185 = vperm.xlu0 %184, %v167
    %v186 = vpop.permute.xlu0 %185
    %vm188 = vcmask 261120
    %v190 = vsel %vm188, %v160, 0
    %v193 = vsel %vm188, %v161, 0
    %v196 = vsel %vm188, %v162, 0
    %v199 = vsel %vm188, %v163, 0
    %201 = vmatprep.subr.mxu0 0.0
    %202 = vmatpush1.msra.mxu0 0.0
    %203 = vmatprep.subr.mxu0 0.0
    %204 = vmatpush1.msra.mxu0 0.0
    %205 = vmatprep.subr.mxu0 0.0
    %206 = vmatpush1.msra.mxu0 0.0
    %207 = vmatprep.subr.mxu0 0.0
    %208 = vmatpush1.msra.mxu0 0.0
    %209 = vmatprep.subr.mxu0 0.0
    %210 = vmatpush1.msra.mxu0 0.0
    %211 = vmatprep.subr.mxu0 0.0
    %212 = vmatpush1.msra.mxu0 0.0
    %213 = vmatprep.subr.mxu0 0.0
    %214 = vmatpush1.msra.mxu0 0.0
    %215 = vmatprep.subr.mxu0 0.0
    %216 = vmatpush1.msra.mxu0 0.0
    %217 = vmatprep.subr.mxu0 0.0
    %218 = vmatpush1.msra.mxu0 0.0
    %219 = vmatprep.subr.mxu0 0.0
    %220 = vmatpush1.msra.mxu0 0.0
    %221 = vmatprep.subr.mxu0 0.0
    %222 = vmatpush1.msra.mxu0 0.0
    %223 = vmatprep.subr.mxu0 0.0
    %224 = vmatpush1.msra.mxu0 0.0
    %225 = vmatprep.subr.mxu0 0.0
    %226 = vmatpush1.msra.mxu0 %v159
    %227 = vmatprep.subr.mxu0 0.0
    %228 = vmatpush1.msra.mxu0 %v158
    %229 = vmatprep.subr.mxu0 0.0
    %230 = vmatpush1.msra.mxu0 %v157
    %231 = vmatprep.subr.mxu0 0.0
    %232 = vmatpush1.msra.mxu0 %v156
    %233 = vmatprep.subr.mxu0 0.0
    %234 = vmatpush2.msra.mxu0 0.0
    %235 = vmatprep.subr.mxu0 0.0
    %236 = vmatpush2.msra.mxu0 0.0
    %237 = vmatprep.subr.mxu0 0.0
    %238 = vmatpush2.msra.mxu0 0.0
    %239 = vmatprep.subr.mxu0 0.0
    %240 = vmatpush2.msra.mxu0 0.0
    %241 = vmatprep.subr.mxu0 0.0
    %242 = vmatpush2.msra.mxu0 0.0
    %243 = vmatprep.subr.mxu0 0.0
    %244 = vmatpush2.msra.mxu0 0.0
    %245 = vmatprep.subr.mxu0 0.0
    %246 = vmatpush2.msra.mxu0 0.0
    %247 = vmatprep.subr.mxu0 0.0
    %248 = vmatpush2.msra.mxu0 0.0
    %249 = vmatprep.subr.mxu0 0.0
    %250 = vmatpush2.msra.mxu0 0.0
    %251 = vmatprep.subr.mxu0 0.0
    %252 = vmatpush2.msra.mxu0 0.0
    %253 = vmatprep.subr.mxu0 0.0
    %254 = vmatpush2.msra.mxu0 0.0
    %255 = vmatprep.subr.mxu0 0.0
    %256 = vmatpush2.msra.mxu0 0.0
    %257 = vmatprep.subr.mxu0 0.0
    %258 = vmatpush2.msra.mxu0 0.0
    %259 = vmatprep.subr.mxu0 0.0
    %260 = vmatpush2.msra.mxu0 0.0
    %261 = vmatprep.subr.mxu0 0.0
    %262 = vmatpush2.msra.mxu0 0.0
    %263 = vmatprep.subr.mxu0 0.0
    %264 = vmatpush2.msra.mxu0 0.0
    %265 = vmatprep.mubr.f32.mxu0 0.0
    %266 = vmatmul.mubr.f32.gmra.mxu0 %v190
    %v267 = vpop.f32.mrf.mxu0
    %v268 = vadd.f32 %v171, %v267
    %v269 = vpop.f32.mrf.mxu0
    %270 = vmatprep.mubr.f32.mxu0 0.0
    %271 = vmatmul.mubr.f32.gmra.mxu0 %v193
    %v272 = vpop.f32.mrf.mxu0
    %v273 = vadd.f32 %v176, %v272
    %v274 = vpop.f32.mrf.mxu0
    %275 = vmatprep.mubr.f32.mxu0 0.0
    %276 = vmatmul.mubr.f32.gmra.mxu0 %v196
    %v277 = vpop.f32.mrf.mxu0
    %v278 = vadd.f32 %v181, %v277
    %v279 = vpop.f32.mrf.mxu0
    %280 = vmatprep.mubr.f32.mxu0 0.0
    %281 = vmatmul.mubr.f32.gmra.mxu0 %v199
    %v282 = vpop.f32.mrf.mxu0
    %v283 = vadd.f32 %v186, %v282
    %v284 = vpop.f32.mrf.mxu0
    %285 = vdwg.mxu0
    %v286 = vtanh.pop %v268
    %v287 = vtanh.pop %v273
    %v288 = vtanh.pop %v278
    %v289 = vtanh.pop %v283
    %v290 = vld [vmem:[%s5] sm:$0xff]
    %v291 = vld [vmem:[%s5 + $0x8] sm:$0xff]
    %v292 = vld [vmem:[%s5 + $0x10] sm:$0xff]
    %v293 = vld [vmem:[%s5 + $0x18] sm:$0xff]
    %s294 = sld [smem:[#allocation2]]
    %296 = vset.pattern.permute.xlu0 0
    %297 = vperm.xlu0 %296, %v290
    %v298 = vpop.permute.xlu0 %297
    %301 = vset.pattern.permute.xlu0 0
    %302 = vperm.xlu0 %301, %v291
    %v303 = vpop.permute.xlu0 %302
    %306 = vset.pattern.permute.xlu0 0
    %307 = vperm.xlu0 %306, %v292
    %v308 = vpop.permute.xlu0 %307
    %311 = vset.pattern.permute.xlu0 0
    %312 = vperm.xlu0 %311, %v293
    %v313 = vpop.permute.xlu0 %312
    %v315 = vmul.f32 %v286, %v298
    %v316 = vmul.f32 %v287, %v303
    %v317 = vmul.f32 %v288, %v308
    %v318 = vmul.f32 %v289, %v313
    %v319 = vadd.f32 %v315, %v316
    %v320 = vadd.f32 %v319, %v317
    %v321 = vadd.f32 %v320, %v318
    %v322 = vrot.slane %v321, 4
    %v323 = vadd.f32 %v321, %v322
    %v324 = vrot.slane %v323, 2
    %v325 = vadd.f32 %v323, %v324
    %v326 = vrot.slane %v325, 1
    %v327 = vadd.f32 %v325, %v326
    %v328 = vstv %s294
    %v329 = vadd.f32 %v327, %v328
    %330 = vst [vmem:[#allocation3] sm:$0x1] %v329
    // Predicated region
    $region30: #{tpu_custom_call.1} parent=1 // pred_check
      _
    $region31: #{tpu_custom_call.1} parent=1 // pred_check_branch
      %332 = sbr.rel (0) target = $region33
    $region32: #{tpu_custom_call.1} parent=1 // pred_region
      %s334 = ssub.s32 16, 16
      %335 = vsyncadd [#allocation4], %s334
      %s337 = sshll.u32 [#allocation3], 4
      %s338 = int_to_ptr.vmem [resolvable:$true] %s337
      %340 = dma.vmem_to_hbm [thread:$0]  %s338, 16, %s7, [#allocation4]
    $region33: #{tpu_custom_call.1} parent=1 // pred_fallthru
      _
    // Predicated region
    $region34: #{tpu_custom_call.1} parent=1 // pred_check
      _
    $region35: #{tpu_custom_call.1} parent=1 // pred_check_branch
      %342 = sbr.rel (0) target = $region37
    $region36: #{tpu_custom_call.1} parent=1 // pred_region
      %343 = dma.done [#allocation4], 16
    $region37: #{tpu_custom_call.1} parent=1 // pred_fallthru
      _
    %344 = vsyncpa [#allocation4], 1

</llo_original>
